<compile_context>
chip_gen: v7x
topology: tpu7x:2x2x1
jax: 0.10.0
libtpu: 0.0.40
codegen_flags: <defaults>
</compile_context>

<pallas_src>
import functools
import math

import jax
import jax.numpy as jnp
from jax.experimental import pallas as pl
from jax.experimental.pallas import tpu as pltpu


def _pe_mxu_kernel(x_ref, c_ref, phase_ref, out_ref):
    # x_ref:     (TB, F)
    # c_ref:     (F, F*2N)  block-diagonal, already scaled by 2*pi
    # phase_ref: (1, F*2N)  per-feature [pi/2]*N + [0]*N
    # out_ref:   (TB, F*2N) lane-dense output slab
    x = x_ref[...].astype(jnp.float32)
    ang = jnp.dot(
        x, c_ref[...],
        preferred_element_type=jnp.float32,
        precision=jax.lax.Precision.HIGHEST,   # keep full f32 angle accuracy
    )
    ang = ang + phase_ref[...]
    out_ref[...] = jnp.sin(ang).astype(out_ref.dtype)   # sin(t+pi/2)=cos(t)


def _pe_loop_kernel(x_ref, coef_ref, phase_ref, out_ref, *, n: int, n_features: int):
    # Large-F fallback: one fused (TB, 2N) sin + one 2N-wide store per feature.
    # coef_ref:  (F, 2N) = 2*pi*[coef | coef]
    # phase_ref: (1, 2N) = [pi/2]*N + [0]*N
    x = x_ref[...].astype(jnp.float32)
    coef = coef_ref[...]
    phase = phase_ref[...]
    two_n = 2 * n
    for f in range(n_features):                       # static -> unrolled
        ang = x[:, f:f + 1] * coef[f:f + 1, :] + phase        # (TB, 2N)
        out_ref[:, f * two_n:(f + 1) * two_n] = jnp.sin(ang).astype(out_ref.dtype)


def _round_up(v: int, m: int) -> int:
    return ((v + m - 1) // m) * m


def periodic_embedding(
    x: jax.Array,
    coefficients: jax.Array,
    *,
    tile_b: int | None = None,
    out_dtype=None,
    use_mxu: bool | None = None,
):
    """x: (B, F), coefficients: (F, N) -> (B, F, 2N)."""
    B, F = x.shape
    F2, N = coefficients.shape
    assert F == F2

    out_dtype = x.dtype if out_dtype is None else jnp.dtype(out_dtype)
    in_bytes = jnp.dtype(x.dtype).itemsize
    out_bytes = jnp.dtype(out_dtype).itemsize
    sublane = 16 if min(in_bytes, out_bytes) < 4 else 8
    two_n = 2 * N
    out_cols = F * two_n

    if use_mxu is None:
        # Block-diagonal C is F x (F*2N) f32; keep the MXU path while it stays small.
        use_mxu = (F * out_cols * 4) <= (3 << 20)

    # --- batch tiling (no pad / no slice; ragged last block handled by Pallas) ---
    if tile_b is None:
        budget = 20 << 20                          # VMEM budget for pipelined tiles
        per_row = 2 * F * in_bytes + 2 * out_cols * out_bytes + 2 * out_cols * 4
        max_rows = max(sublane, budget // per_row)
        tile_b = min(1024, int(max_rows))
        # grid>=2 split only when each half still has >=512 rows (v7x 2 TCs benefit;
        # on single-TC v5e/v6e small tiles only hurt).
        if B >= 1024:
            tile_b = min(tile_b, _round_up(pl.cdiv(B, 2), sublane))
        tile_b = max(sublane, (tile_b // sublane) * sublane)
    if tile_b >= B:
        tile_b = B                                  # block dim == array dim is always legal
    else:
        assert tile_b % sublane == 0, (tile_b, sublane)
    grid = (pl.cdiv(B, tile_b),)

    # --- constants built once on the host/JAX side ---
    coef2 = (2.0 * math.pi) * coefficients.astype(jnp.float32)          # (F, N)
    coef_cat = jnp.concatenate([coef2, coef2], axis=-1)                  # (F, 2N)
    phase_row = jnp.concatenate(
        [jnp.full((N,), 0.5 * math.pi, jnp.float32), jnp.zeros((N,), jnp.float32)]
    )                                                                    # (2N,)

    if use_mxu:
        eye = jnp.eye(F, dtype=jnp.float32)
        cmat = (eye[:, :, None] * coef_cat[None, :, :]).reshape(F, out_cols)
        phase_full = jnp.tile(phase_row, (F,))[None, :]                  # (1, F*2N)
        kernel = _pe_mxu_kernel
        in_arrays = (x, cmat, phase_full)
        in_specs = [
            pl.BlockSpec((tile_b, F), lambda i: (i, 0)),
            pl.BlockSpec((F, out_cols), lambda i: (0, 0)),
            pl.BlockSpec((1, out_cols), lambda i: (0, 0)),
        ]
        coef_bytes = F * out_cols * 4 + out_cols * 4
        flops = 2 * B * F * out_cols + B * out_cols
    else:
        kernel = functools.partial(_pe_loop_kernel, n=N, n_features=F)
        in_arrays = (x, coef_cat, phase_row[None, :])
        in_specs = [
            pl.BlockSpec((tile_b, F), lambda i: (i, 0)),
            pl.BlockSpec((F, two_n), lambda i: (0, 0)),
            pl.BlockSpec((1, two_n), lambda i: (0, 0)),
        ]
        coef_bytes = F * two_n * 4 + two_n * 4
        flops = 2 * B * out_cols

    # Scoped VMEM: double-buffered in/out tiles + constants + f32 temps + headroom.
    vmem_need = (2 * tile_b * F * in_bytes
                 + 2 * tile_b * out_cols * out_bytes
                 + 2 * coef_bytes
                 + 2 * tile_b * out_cols * 4)
    vmem_limit = int(max(8 << 20, min(32 << 20, vmem_need + (4 << 20))))

    cost = pl.CostEstimate(
        flops=flops,
        transcendentals=B * out_cols,
        bytes_accessed=B * F * in_bytes + coef_bytes + B * out_cols * out_bytes,
    )

    out2d = pl.pallas_call(
        kernel,
        out_shape=jax.ShapeDtypeStruct((B, out_cols), out_dtype),
        grid_spec=pltpu.PrefetchScalarGridSpec(
            num_scalar_prefetch=0,
            grid=grid,
            in_specs=in_specs,
            out_specs=pl.BlockSpec((tile_b, out_cols), lambda i: (i, 0)),
        ),
        compiler_params=pltpu.CompilerParams(
            dimension_semantics=("parallel",),
            vmem_limit_bytes=vmem_limit,
        ),
        cost_estimate=cost,
    )(*in_arrays)

    # (B, F*2N) and (B, F, 2N) share the same HBM layout; reshape is metadata-only.
    return out2d.reshape(B, F, two_n)


def make_coefficients(n_features: int, n: int, sigma: float,
                      initialization: str = "log-linear") -> jax.Array:
    # Deterministic parameter init matching PeriodicEmbedding.__init__.
    if initialization == "log-linear":
        coeffs = sigma ** (jnp.arange(n, dtype=jnp.float32) / n)     # (n,)
        coeffs = jnp.broadcast_to(coeffs[None, :], (n_features, n))
    else:
        assert initialization == "normal"
        key = jax.random.PRNGKey(42)
        coeffs = sigma * jax.random.normal(key, (n_features, n), dtype=jnp.float32)
    return coeffs.astype(jnp.float32)


def _reference(x, coefficients):
    angle = 2.0 * math.pi * coefficients[None, :, :] * x[:, :, None]
    return jnp.concatenate([jnp.cos(angle), jnp.sin(angle)], axis=-1)


if __name__ == "__main__":
    sigma = 0.1
    key = jax.random.PRNGKey(0)
    k1, k2 = jax.random.split(key)

    # Case 1: small shapes, MXU angle-slab path.  B=8, F=4, N=64 -> (8, 4, 128)
    B, F, N = 8, 4, 64
    x = jax.random.normal(k1, (B, F), dtype=jnp.float32)
    coefficients = make_coefficients(F, N, sigma, "log-linear")
    out = jax.block_until_ready(periodic_embedding(x, coefficients))
    ref = _reference(x, coefficients)
    assert out.shape == (B, F, 2 * N)
    assert jnp.allclose(out, ref, atol=1e-4, rtol=1e-4)

    # Case 2: same shapes through the per-feature (large-F fallback) kernel.
    out2 = jax.block_until_ready(periodic_embedding(x, coefficients, use_mxu=False))
    assert jnp.allclose(out2, ref, atol=1e-4, rtol=1e-4)

    # Case 3: ragged batch (tile does not divide B) -> no pad, no output slice.
    B3 = 1050
    x3 = jax.random.normal(k2, (B3, F), dtype=jnp.float32)
    out3 = jax.block_until_ready(periodic_embedding(x3, coefficients))
    ref3 = _reference(x3, coefficients)
    assert out3.shape == (B3, F, 2 * N)
    assert jnp.allclose(out3, ref3, atol=1e-4, rtol=1e-4)

    print("KERNEL_OK")
</pallas_src>

<mosaic_0001>
module attributes {stable_mosaic.version = 11 : i64} {
  func.func @_pe_mxu_kernel(%arg0: i32, %arg1: memref<8x4xf32, #tpu.memory_space<vmem>>, %arg2: memref<4x512xf32, #tpu.memory_space<vmem>>, %arg3: memref<1x512xf32, #tpu.memory_space<vmem>>, %arg4: memref<8x512xf32, #tpu.memory_space<vmem>>) attributes {dimension_semantics = [#tpu.dimension_semantics<parallel>], iteration_bounds = array<i64: 1>, scalar_prefetch = 0 : i64, scratch_operands = 0 : i64, tpu.core_type = #tpu.core_type<tc>, window_params = [{transform_indices = @transform_0, window_bounds = array<i64: 8, 4>}, {pipeline_mode = #tpu.pipeline_mode<synchronous>, transform_indices = @transform_1, window_bounds = array<i64: 4, 512>}, {pipeline_mode = #tpu.pipeline_mode<synchronous>, transform_indices = @transform_2, window_bounds = array<i64: 1, 512>}, {transform_indices = @transform_3, window_bounds = array<i64: 8, 512>}]} {
    %c0 = arith.constant 0 : index
    %c0_0 = arith.constant 0 : index
    %0 = vector.load %arg1[%c0, %c0_0] : memref<8x4xf32, #tpu.memory_space<vmem>>, vector<8x4xf32>
    %c0_1 = arith.constant 0 : index
    %c0_2 = arith.constant 0 : index
    %1 = vector.load %arg2[%c0_1, %c0_2] : memref<4x512xf32, #tpu.memory_space<vmem>>, vector<4x512xf32>
    %cst = arith.constant dense<0.000000e+00> : vector<8x512xf32>
    %2 = tpu.matmul %0, %1, %cst {dimension_numbers = #tpu.dot_dimension_numbers<[1], [0], [0], [1], [0, 0, 1, 1], [], []>, precision = #tpu.contract_precision<fp32>} : vector<8x4xf32>, vector<4x512xf32>, vector<8x512xf32> -> vector<8x512xf32>
    %c0_3 = arith.constant 0 : index
    %c0_4 = arith.constant 0 : index
    %3 = vector.load %arg3[%c0_3, %c0_4] : memref<1x512xf32, #tpu.memory_space<vmem>>, vector<1x512xf32>
    %4 = vector.broadcast %3 : vector<1x512xf32> to vector<8x512xf32>
    %5 = arith.addf %2, %4 : vector<8x512xf32>
    %6 = math.sin %5 : vector<8x512xf32>
    %c0_5 = arith.constant 0 : index
    %c0_6 = arith.constant 0 : index
    %7 = vector.load %arg4[%c0_5, %c0_6] : memref<8x512xf32, #tpu.memory_space<vmem>>, vector<8x512xf32>
    tpu.vector_store %arg4[%c0_5, %c0_6], %6 {strides = array<i32>} : memref<8x512xf32, #tpu.memory_space<vmem>>, vector<8x512xf32>,
    return
  }
  func.func @transform_0(%arg0: i32) -> (i32, i32) {
    %c0_i32 = arith.constant 0 : i32
    %c0_i32_0 = arith.constant 0 : i32
    return %arg0, %c0_i32 : i32, i32
  }
  func.func @transform_1(%arg0: i32) -> (i32, i32) {
    %c0_i32 = arith.constant 0 : i32
    %c0_i32_0 = arith.constant 0 : i32
    %c0_i32_1 = arith.constant 0 : i32
    return %c0_i32, %c0_i32_0 : i32, i32
  }
  func.func @transform_2(%arg0: i32) -> (i32, i32) {
    %c0_i32 = arith.constant 0 : i32
    %c0_i32_0 = arith.constant 0 : i32
    %c0_i32_1 = arith.constant 0 : i32
    return %c0_i32, %c0_i32_0 : i32, i32
  }
  func.func @transform_3(%arg0: i32) -> (i32, i32) {
    %c0_i32 = arith.constant 0 : i32
    %c0_i32_0 = arith.constant 0 : i32
    return %arg0, %c0_i32 : i32, i32
  }
}

</mosaic_0001>

<llo_original>
// kernel: tpu_custom_call.1
$region0: #{tpu_custom_call.1}
  #allocation0 [shape = 'u32[]', space=smem, size = 0x4, offset = 0x4, fixed_abs, tag = 'smem constant byte address 0x4 - core index']
  #allocation1 [shape = 'u32[144,128]{1,0:T(1,128)}', space=vmem, size = 0x12000, scoped, tag = 'internal scratch']
  %s0 = inlined_call_operand.vmem [shape: f32[8,4], index: 0, kind: input, shape index: {}]
  %s1 = inlined_call_operand.hbm [shape: f32[4,512], index: 1, kind: input, shape index: {}]
  %s2 = inlined_call_operand.vmem [shape: f32[1,512], index: 2, kind: input, shape index: {}]
  %s3 = inlined_call_operand.hbm [shape: f32[8,512], index: 3, kind: output, shape index: {}]
  %s4 = sld [smem:[#allocation0]]
  $region26: #{tpu_custom_call.1} parent=0
    _
  %s6 = ssub.s32 1, %s4
  %s7 = scalar_select 0, %s6, %s4
  $region1: #{tpu_custom_call.1} parent=0
    #allocation2 [shape = 'u8[8192]{0}', space=vmem, size = 0x2000, scoped, tag = 'input window, operand 1, single buffered']
    #allocation3 [shape = 's32[1]{0}', space=sflag, size = 0x4, scoped, tag = 'scoped memory for tpu_custom_call.1']
    #allocation4 [shape = 's32[1]{0}', space=sflag, size = 0x4, scoped, tag = 'scoped memory for tpu_custom_call.1']
    #allocation5 [shape = 'u8[16384]{0}', space=vmem, size = 0x4000, scoped, tag = 'output window, operand 0, single buffered']
    %8 = vsyncpa [#allocation3], 0
    %9 = vsyncpa [#allocation4], 0
    // Predicated region
    $region2: #{tpu_custom_call.1} parent=1 // pred_check
      _
    $region3: #{tpu_custom_call.1} parent=1 // pred_check_branch
      %11 = sbr.rel (0) target = $region5
    $region4: #{tpu_custom_call.1} parent=1 // pred_region
      _
    $region5: #{tpu_custom_call.1} parent=1 // pred_fallthru
      _
    // Predicated region
    $region6: #{tpu_custom_call.1} parent=1 // pred_check
      _
    $region7: #{tpu_custom_call.1} parent=1 // pred_check_branch
      %13 = sbr.rel (0) target = $region9
    $region8: #{tpu_custom_call.1} parent=1 // pred_region
      %s15 = ssub.s32 256, 256
      %16 = vsyncadd [#allocation3], %s15
      %s18 = sshll.u32 [#allocation2], 4
      %s19 = int_to_ptr.vmem [resolvable:$true] %s18
      %21 = dma.hbm_to_vmem [thread:$0]  %s1, 256, %s19, [#allocation3]
    $region9: #{tpu_custom_call.1} parent=1 // pred_fallthru
      _
    // Predicated region
    $region10: #{tpu_custom_call.1} parent=1 // pred_check
      _
    $region11: #{tpu_custom_call.1} parent=1 // pred_check_branch
      %23 = sbr.rel (0) target = $region13
    $region12: #{tpu_custom_call.1} parent=1 // pred_region
      _
    $region13: #{tpu_custom_call.1} parent=1 // pred_fallthru
      _
    // Predicated region
    $region14: #{tpu_custom_call.1} parent=1 // pred_check
      _
    $region15: #{tpu_custom_call.1} parent=1 // pred_check_branch
      %25 = sbr.rel (0) target = $region17
    $region16: #{tpu_custom_call.1} parent=1 // pred_region
      %26 = dma.done [#allocation3], 256
    $region17: #{tpu_custom_call.1} parent=1 // pred_fallthru
      _
    %v27 = vld [vmem:[%s0] sm:$0xff]
    %v28 = vld [vmem:[#allocation2] sm:$0xff]
    %v29 = vld [vmem:[#allocation2 + $0x8] sm:$0xff]
    %v30 = vld [vmem:[%s2] sm:$0xf]
    %v32 = vlaneseq
    %v33 = vshrl.u32 %v32, 7
    %v34 = vsub.s32 0, %v33
    %v35 = vrot.slane %v30, %v34
    %v36 = vlaneseq
    %v37 = vshrl.u32 %v36, 7
    %v38 = vsub.s32 1, %v37
    %v39 = vrot.slane %v30, %v38
    %v40 = vlaneseq
    %v41 = vshrl.u32 %v40, 7
    %v42 = vsub.s32 2, %v41
    %v43 = vrot.slane %v30, %v42
    %v44 = vlaneseq
    %v45 = vshrl.u32 %v44, 7
    %v46 = vsub.s32 3, %v45
    %v47 = vrot.slane %v30, %v46
    %v54 = vcombine.high %v28, %v28
    %v55 = vcombine.high %v29, %v29
    %vm56 = vcmask 31744
    %v58 = vsel %vm56, %v27, 0
    %vm60 = vcmask 1043456
    %v61 = vsel %vm60, %v28, 0
    %v63 = vsel %vm60, %v54, 0
    %v65 = vsel %vm60, %v29, 0
    %v67 = vsel %vm60, %v55, 0
    %v69 = vand.u32 %v63, 4294901760
    %70 = vmatprep.subr.mxu0 %v69
    %v71 = vand.u32 %v61, 4294901760
    %72 = vmatpush1.msra.mxu0 %v71
    %73 = vmatprep.subr.mxu0 0.0
    %74 = vmatpush1.msra.mxu0 0.0
    %75 = vmatprep.subr.mxu0 0.0
    %76 = vmatpush1.msra.mxu0 0.0
    %77 = vmatprep.subr.mxu0 0.0
    %78 = vmatpush1.msra.mxu0 0.0
    %79 = vmatprep.subr.mxu0 0.0
    %80 = vmatpush1.msra.mxu0 0.0
    %81 = vmatprep.subr.mxu0 0.0
    %82 = vmatpush1.msra.mxu0 0.0
    %83 = vmatprep.subr.mxu0 0.0
    %84 = vmatpush1.msra.mxu0 0.0
    %85 = vmatprep.subr.mxu0 0.0
    %86 = vmatpush1.msra.mxu0 0.0
    %87 = vmatprep.subr.mxu0 0.0
    %88 = vmatpush1.msra.mxu0 0.0
    %89 = vmatprep.subr.mxu0 0.0
    %90 = vmatpush1.msra.mxu0 0.0
    %91 = vmatprep.subr.mxu0 0.0
    %92 = vmatpush1.msra.mxu0 0.0
    %93 = vmatprep.subr.mxu0 0.0
    %94 = vmatpush1.msra.mxu0 0.0
    %95 = vmatprep.subr.mxu0 0.0
    %96 = vmatpush1.msra.mxu0 0.0
    %97 = vmatprep.subr.mxu0 0.0
    %98 = vmatpush1.msra.mxu0 0.0
    %99 = vmatprep.subr.mxu0 0.0
    %100 = vmatpush1.msra.mxu0 0.0
    %101 = vmatprep.subr.mxu0 0.0
    %102 = vmatpush1.msra.mxu0 0.0
    %103 = vmatprep.subr.mxu0 0.0
    %104 = vmatpush1.msra.mxu0 0.0
    %105 = vmatprep.subr.mxu0 0.0
    %106 = vmatpush1.msra.mxu0 0.0
    %107 = vmatprep.subr.mxu0 0.0
    %108 = vmatpush1.msra.mxu0 0.0
    %109 = vmatprep.subr.mxu0 0.0
    %110 = vmatpush1.msra.mxu0 0.0
    %111 = vmatprep.subr.mxu0 0.0
    %112 = vmatpush1.msra.mxu0 0.0
    %113 = vmatprep.subr.mxu0 0.0
    %114 = vmatpush1.msra.mxu0 0.0
    %115 = vmatprep.subr.mxu0 0.0
    %116 = vmatpush1.msra.mxu0 0.0
    %117 = vmatprep.subr.mxu0 0.0
    %118 = vmatpush1.msra.mxu0 0.0
    %119 = vmatprep.subr.mxu0 0.0
    %120 = vmatpush1.msra.mxu0 0.0
    %121 = vmatprep.subr.mxu0 0.0
    %122 = vmatpush1.msra.mxu0 0.0
    %123 = vmatprep.subr.mxu0 0.0
    %124 = vmatpush1.msra.mxu0 0.0
    %125 = vmatprep.subr.mxu0 0.0
    %126 = vmatpush1.msra.mxu0 0.0
    %127 = vmatprep.subr.mxu0 0.0
    %128 = vmatpush1.msra.mxu0 0.0
    %129 = vmatprep.subr.mxu0 0.0
    %130 = vmatpush1.msra.mxu0 0.0
    %131 = vmatprep.subr.mxu0 0.0
    %132 = vmatpush1.msra.mxu0 0.0
    %133 = vmatprep.subr.mxu0 0.0
    %134 = vmatpush1.msra.mxu0 0.0
    %135 = vmatprep.mubr.f32.mxu0 0.0
    %v136 = vand.u32 %v58, 4294901760
    %v137 = vsub.f32 %v58, %v136
    %v138 = vand.u32 %v137, 4294901760
    %v139 = vsub.f32 %v137, %v138
    %v140 = vand.u32 %v139, 4294901760
    %141 = vmatmul.mubr.f32.gmra.mrb[0].mxu0 %v140
    %v142 = vpop.f32.mrb[0].mxu0
    %v143 = vadd.f32 %v35, %v142
    %v144 = vpop.f32.mrb[0].mxu0
    %v145 = vadd.f32 %v39, %v144
    %146 = vdwg.mxu0
    %v147 = vand.u32 %v63, 4294901760
    %v148 = vsub.f32 %v63, %v147
    %v149 = vand.u32 %v148, 4294901760
    %v150 = vsub.f32 %v148, %v149
    %v151 = vand.u32 %v150, 4294901760
    %152 = vmatprep.subr.mxu0 %v151
    %v153 = vand.u32 %v61, 4294901760
    %v154 = vsub.f32 %v61, %v153
    %v155 = vand.u32 %v154, 4294901760
    %v156 = vsub.f32 %v154, %v155
    %v157 = vand.u32 %v156, 4294901760
    %158 = vmatpush1.msra.mxu0 %v157
    %159 = vmatprep.subr.mxu0 0.0
    %160 = vmatpush1.msra.mxu0 0.0
    %161 = vmatprep.subr.mxu0 0.0
    %162 = vmatpush1.msra.mxu0 0.0
    %163 = vmatprep.subr.mxu0 0.0
    %164 = vmatpush1.msra.mxu0 0.0
    %165 = vmatprep.subr.mxu0 0.0
    %166 = vmatpush1.msra.mxu0 0.0
    %167 = vmatprep.subr.mxu0 0.0
    %168 = vmatpush1.msra.mxu0 0.0
    %169 = vmatprep.subr.mxu0 0.0
    %170 = vmatpush1.msra.mxu0 0.0
    %171 = vmatprep.subr.mxu0 0.0
    %172 = vmatpush1.msra.mxu0 0.0
    %173 = vmatprep.subr.mxu0 0.0
    %174 = vmatpush1.msra.mxu0 0.0
    %175 = vmatprep.subr.mxu0 0.0
    %176 = vmatpush1.msra.mxu0 0.0
    %177 = vmatprep.subr.mxu0 0.0
    %178 = vmatpush1.msra.mxu0 0.0
    %179 = vmatprep.subr.mxu0 0.0
    %180 = vmatpush1.msra.mxu0 0.0
    %181 = vmatprep.subr.mxu0 0.0
    %182 = vmatpush1.msra.mxu0 0.0
    %183 = vmatprep.subr.mxu0 0.0
    %184 = vmatpush1.msra.mxu0 0.0
    %185 = vmatprep.subr.mxu0 0.0
    %186 = vmatpush1.msra.mxu0 0.0
    %187 = vmatprep.subr.mxu0 0.0
    %188 = vmatpush1.msra.mxu0 0.0
    %189 = vmatprep.subr.mxu0 0.0
    %190 = vmatpush1.msra.mxu0 0.0
    %191 = vmatprep.subr.mxu0 0.0
    %192 = vmatpush1.msra.mxu0 0.0
    %193 = vmatprep.subr.mxu0 0.0
    %194 = vmatpush1.msra.mxu0 0.0
    %195 = vmatprep.subr.mxu0 0.0
    %196 = vmatpush1.msra.mxu0 0.0
    %197 = vmatprep.subr.mxu0 0.0
    %198 = vmatpush1.msra.mxu0 0.0
    %199 = vmatprep.subr.mxu0 0.0
    %200 = vmatpush1.msra.mxu0 0.0
    %201 = vmatprep.subr.mxu0 0.0
    %202 = vmatpush1.msra.mxu0 0.0
    %203 = vmatprep.subr.mxu0 0.0
    %204 = vmatpush1.msra.mxu0 0.0
    %205 = vmatprep.subr.mxu0 0.0
    %206 = vmatpush1.msra.mxu0 0.0
    %207 = vmatprep.subr.mxu0 0.0
    %208 = vmatpush1.msra.mxu0 0.0
    %209 = vmatprep.subr.mxu0 0.0
    %210 = vmatpush1.msra.mxu0 0.0
    %211 = vmatprep.subr.mxu0 0.0
    %212 = vmatpush1.msra.mxu0 0.0
    %213 = vmatprep.subr.mxu0 0.0
    %214 = vmatpush1.msra.mxu0 0.0
    %215 = vmatprep.subr.mxu0 0.0
    %216 = vmatpush1.msra.mxu0 0.0
    %217 = vmatprep.subr.mxu0 0.0
    %218 = vmatpush1.msra.mxu0 0.0
    %219 = vmatprep.subr.mxu0 0.0
    %220 = vmatpush1.msra.mxu0 0.0
    %221 = vmatprep.mubr.f32.mxu0 0.0
    %v222 = vand.u32 %v58, 4294901760
    %223 = vmatmul.mubr.f32.gmra.mrb[0].mxu0 %v222
    %v224 = vpop.f32.mrb[0].mxu0
    %v225 = vadd.f32 %v143, %v224
    %v226 = vpop.f32.mrb[0].mxu0
    %v227 = vadd.f32 %v145, %v226
    %228 = vdwg.mxu0
    %v229 = vand.u32 %v63, 4294901760
    %v230 = vsub.f32 %v63, %v229
    %231 = vmatprep.subr.mxu0 %v230
    %v232 = vand.u32 %v61, 4294901760
    %v233 = vsub.f32 %v61, %v232
    %234 = vmatpush1.msra.mxu0 %v233
    %235 = vmatprep.subr.mxu0 0.0
    %236 = vmatpush1.msra.mxu0 0.0
    %237 = vmatprep.subr.mxu0 0.0
    %238 = vmatpush1.msra.mxu0 0.0
    %239 = vmatprep.subr.mxu0 0.0
    %240 = vmatpush1.msra.mxu0 0.0
    %241 = vmatprep.subr.mxu0 0.0
    %242 = vmatpush1.msra.mxu0 0.0
    %243 = vmatprep.subr.mxu0 0.0
    %244 = vmatpush1.msra.mxu0 0.0
    %245 = vmatprep.subr.mxu0 0.0
    %246 = vmatpush1.msra.mxu0 0.0
    %247 = vmatprep.subr.mxu0 0.0
    %248 = vmatpush1.msra.mxu0 0.0
    %249 = vmatprep.subr.mxu0 0.0
    %250 = vmatpush1.msra.mxu0 0.0
    %251 = vmatprep.subr.mxu0 0.0
    %252 = vmatpush1.msra.mxu0 0.0
    %253 = vmatprep.subr.mxu0 0.0
    %254 = vmatpush1.msra.mxu0 0.0
    %255 = vmatprep.subr.mxu0 0.0
    %256 = vmatpush1.msra.mxu0 0.0
    %257 = vmatprep.subr.mxu0 0.0
    %258 = vmatpush1.msra.mxu0 0.0
    %259 = vmatprep.subr.mxu0 0.0
    %260 = vmatpush1.msra.mxu0 0.0
    %261 = vmatprep.subr.mxu0 0.0
    %262 = vmatpush1.msra.mxu0 0.0
    %263 = vmatprep.subr.mxu0 0.0
    %264 = vmatpush1.msra.mxu0 0.0
    %265 = vmatprep.subr.mxu0 0.0
    %266 = vmatpush1.msra.mxu0 0.0
    %267 = vmatprep.subr.mxu0 0.0
    %268 = vmatpush1.msra.mxu0 0.0
    %269 = vmatprep.subr.mxu0 0.0
    %270 = vmatpush1.msra.mxu0 0.0
    %271 = vmatprep.subr.mxu0 0.0
    %272 = vmatpush1.msra.mxu0 0.0
    %273 = vmatprep.subr.mxu0 0.0
    %274 = vmatpush1.msra.mxu0 0.0
    %275 = vmatprep.subr.mxu0 0.0
    %276 = vmatpush1.msra.mxu0 0.0
    %277 = vmatprep.subr.mxu0 0.0
    %278 = vmatpush1.msra.mxu0 0.0
    %279 = vmatprep.subr.mxu0 0.0
    %280 = vmatpush1.msra.mxu0 0.0
    %281 = vmatprep.subr.mxu0 0.0
    %282 = vmatpush1.msra.mxu0 0.0
    %283 = vmatprep.subr.mxu0 0.0
    %284 = vmatpush1.msra.mxu0 0.0
    %285 = vmatprep.subr.mxu0 0.0
    %286 = vmatpush1.msra.mxu0 0.0
    %287 = vmatprep.subr.mxu0 0.0
    %288 = vmatpush1.msra.mxu0 0.0
    %289 = vmatprep.subr.mxu0 0.0
    %290 = vmatpush1.msra.mxu0 0.0
    %291 = vmatprep.subr.mxu0 0.0
    %292 = vmatpush1.msra.mxu0 0.0
    %293 = vmatprep.subr.mxu0 0.0
    %294 = vmatpush1.msra.mxu0 0.0
    %295 = vmatprep.subr.mxu0 0.0
    %296 = vmatpush1.msra.mxu0 0.0
    %297 = vmatprep.mubr.f32.mxu0 0.0
    %v298 = vand.u32 %v58, 4294901760
    %v299 = vsub.f32 %v58, %v298
    %300 = vmatmul.mubr.f32.gmra.mrb[0].mxu0 %v299
    %v301 = vpop.f32.mrb[0].mxu0
    %v302 = vadd.f32 %v225, %v301
    %v303 = vpop.f32.mrb[0].mxu0
    %v304 = vadd.f32 %v227, %v303
    %305 = vdwg.mxu0
    %v306 = vand.u32 %v63, 4294901760
    %307 = vmatprep.subr.mxu0 %v306
    %v308 = vand.u32 %v61, 4294901760
    %309 = vmatpush1.msra.mxu0 %v308
    %310 = vmatprep.subr.mxu0 0.0
    %311 = vmatpush1.msra.mxu0 0.0
    %312 = vmatprep.subr.mxu0 0.0
    %313 = vmatpush1.msra.mxu0 0.0
    %314 = vmatprep.subr.mxu0 0.0
    %315 = vmatpush1.msra.mxu0 0.0
    %316 = vmatprep.subr.mxu0 0.0
    %317 = vmatpush1.msra.mxu0 0.0
    %318 = vmatprep.subr.mxu0 0.0
    %319 = vmatpush1.msra.mxu0 0.0
    %320 = vmatprep.subr.mxu0 0.0
    %321 = vmatpush1.msra.mxu0 0.0
    %322 = vmatprep.subr.mxu0 0.0
    %323 = vmatpush1.msra.mxu0 0.0
    %324 = vmatprep.subr.mxu0 0.0
    %325 = vmatpush1.msra.mxu0 0.0
    %326 = vmatprep.subr.mxu0 0.0
    %327 = vmatpush1.msra.mxu0 0.0
    %328 = vmatprep.subr.mxu0 0.0
    %329 = vmatpush1.msra.mxu0 0.0
    %330 = vmatprep.subr.mxu0 0.0
    %331 = vmatpush1.msra.mxu0 0.0
    %332 = vmatprep.subr.mxu0 0.0
    %333 = vmatpush1.msra.mxu0 0.0
    %334 = vmatprep.subr.mxu0 0.0
    %335 = vmatpush1.msra.mxu0 0.0
    %336 = vmatprep.subr.mxu0 0.0
    %337 = vmatpush1.msra.mxu0 0.0
    %338 = vmatprep.subr.mxu0 0.0
    %339 = vmatpush1.msra.mxu0 0.0
    %340 = vmatprep.subr.mxu0 0.0
    %341 = vmatpush1.msra.mxu0 0.0
    %342 = vmatprep.subr.mxu0 0.0
    %343 = vmatpush1.msra.mxu0 0.0
    %344 = vmatprep.subr.mxu0 0.0
    %345 = vmatpush1.msra.mxu0 0.0
    %346 = vmatprep.subr.mxu0 0.0
    %347 = vmatpush1.msra.mxu0 0.0
    %348 = vmatprep.subr.mxu0 0.0
    %349 = vmatpush1.msra.mxu0 0.0
    %350 = vmatprep.subr.mxu0 0.0
    %351 = vmatpush1.msra.mxu0 0.0
    %352 = vmatprep.subr.mxu0 0.0
    %353 = vmatpush1.msra.mxu0 0.0
    %354 = vmatprep.subr.mxu0 0.0
    %355 = vmatpush1.msra.mxu0 0.0
    %356 = vmatprep.subr.mxu0 0.0
    %357 = vmatpush1.msra.mxu0 0.0
    %358 = vmatprep.subr.mxu0 0.0
    %359 = vmatpush1.msra.mxu0 0.0
    %360 = vmatprep.subr.mxu0 0.0
    %361 = vmatpush1.msra.mxu0 0.0
    %362 = vmatprep.subr.mxu0 0.0
    %363 = vmatpush1.msra.mxu0 0.0
    %364 = vmatprep.subr.mxu0 0.0
    %365 = vmatpush1.msra.mxu0 0.0
    %366 = vmatprep.subr.mxu0 0.0
    %367 = vmatpush1.msra.mxu0 0.0
    %368 = vmatprep.subr.mxu0 0.0
    %369 = vmatpush1.msra.mxu0 0.0
    %370 = vmatprep.subr.mxu0 0.0
    %371 = vmatpush1.msra.mxu0 0.0
    %372 = vmatprep.mubr.f32.mxu0 0.0
    %v373 = vand.u32 %v58, 4294901760
    %v374 = vsub.f32 %v58, %v373
    %v375 = vand.u32 %v374, 4294901760
    %376 = vmatmul.mubr.f32.gmra.mrb[0].mxu0 %v375
    %v377 = vpop.f32.mrb[0].mxu0
    %v378 = vadd.f32 %v302, %v377
    %v379 = vpop.f32.mrb[0].mxu0
    %v380 = vadd.f32 %v304, %v379
    %381 = vdwg.mxu0
    %v382 = vand.u32 %v63, 4294901760
    %v383 = vsub.f32 %v63, %v382
    %v384 = vand.u32 %v383, 4294901760
    %385 = vmatprep.subr.mxu0 %v384
    %v386 = vand.u32 %v61, 4294901760
    %v387 = vsub.f32 %v61, %v386
    %v388 = vand.u32 %v387, 4294901760
    %389 = vmatpush1.msra.mxu0 %v388
    %390 = vmatprep.subr.mxu0 0.0
    %391 = vmatpush1.msra.mxu0 0.0
    %392 = vmatprep.subr.mxu0 0.0
    %393 = vmatpush1.msra.mxu0 0.0
    %394 = vmatprep.subr.mxu0 0.0
    %395 = vmatpush1.msra.mxu0 0.0
    %396 = vmatprep.subr.mxu0 0.0
    %397 = vmatpush1.msra.mxu0 0.0
    %398 = vmatprep.subr.mxu0 0.0
    %399 = vmatpush1.msra.mxu0 0.0
    %400 = vmatprep.subr.mxu0 0.0
    %401 = vmatpush1.msra.mxu0 0.0
    %402 = vmatprep.subr.mxu0 0.0
    %403 = vmatpush1.msra.mxu0 0.0
    %404 = vmatprep.subr.mxu0 0.0
    %405 = vmatpush1.msra.mxu0 0.0
    %406 = vmatprep.subr.mxu0 0.0
    %407 = vmatpush1.msra.mxu0 0.0
    %408 = vmatprep.subr.mxu0 0.0
    %409 = vmatpush1.msra.mxu0 0.0
    %410 = vmatprep.subr.mxu0 0.0
    %411 = vmatpush1.msra.mxu0 0.0
    %412 = vmatprep.subr.mxu0 0.0
    %413 = vmatpush1.msra.mxu0 0.0
    %414 = vmatprep.subr.mxu0 0.0
    %415 = vmatpush1.msra.mxu0 0.0
    %416 = vmatprep.subr.mxu0 0.0
    %417 = vmatpush1.msra.mxu0 0.0
    %418 = vmatprep.subr.mxu0 0.0
    %419 = vmatpush1.msra.mxu0 0.0
    %420 = vmatprep.subr.mxu0 0.0
    %421 = vmatpush1.msra.mxu0 0.0
    %422 = vmatprep.subr.mxu0 0.0
    %423 = vmatpush1.msra.mxu0 0.0
    %424 = vmatprep.subr.mxu0 0.0
    %425 = vmatpush1.msra.mxu0 0.0
    %426 = vmatprep.subr.mxu0 0.0
    %427 = vmatpush1.msra.mxu0 0.0
    %428 = vmatprep.subr.mxu0 0.0
    %429 = vmatpush1.msra.mxu0 0.0
    %430 = vmatprep.subr.mxu0 0.0
    %431 = vmatpush1.msra.mxu0 0.0
    %432 = vmatprep.subr.mxu0 0.0
    %433 = vmatpush1.msra.mxu0 0.0
    %434 = vmatprep.subr.mxu0 0.0
    %435 = vmatpush1.msra.mxu0 0.0
    %436 = vmatprep.subr.mxu0 0.0
    %437 = vmatpush1.msra.mxu0 0.0
    %438 = vmatprep.subr.mxu0 0.0
    %439 = vmatpush1.msra.mxu0 0.0
    %440 = vmatprep.subr.mxu0 0.0
    %441 = vmatpush1.msra.mxu0 0.0
    %442 = vmatprep.subr.mxu0 0.0
    %443 = vmatpush1.msra.mxu0 0.0
    %444 = vmatprep.subr.mxu0 0.0
    %445 = vmatpush1.msra.mxu0 0.0
    %446 = vmatprep.subr.mxu0 0.0
    %447 = vmatpush1.msra.mxu0 0.0
    %448 = vmatprep.subr.mxu0 0.0
    %449 = vmatpush1.msra.mxu0 0.0
    %450 = vmatprep.subr.mxu0 0.0
    %451 = vmatpush1.msra.mxu0 0.0
    %452 = vmatprep.mubr.f32.mxu0 0.0
    %v453 = vand.u32 %v58, 4294901760
    %454 = vmatmul.mubr.f32.gmra.mrb[0].mxu0 %v453
    %v455 = vpop.f32.mrb[0].mxu0
    %v456 = vadd.f32 %v378, %v455
    %v457 = vpop.f32.mrb[0].mxu0
    %v458 = vadd.f32 %v380, %v457
    %459 = vdwg.mxu0
    %v460 = vand.u32 %v63, 4294901760
    %461 = vmatprep.subr.mxu0 %v460
    %v462 = vand.u32 %v61, 4294901760
    %463 = vmatpush1.msra.mxu0 %v462
    %464 = vmatprep.subr.mxu0 0.0
    %465 = vmatpush1.msra.mxu0 0.0
    %466 = vmatprep.subr.mxu0 0.0
    %467 = vmatpush1.msra.mxu0 0.0
    %468 = vmatprep.subr.mxu0 0.0
    %469 = vmatpush1.msra.mxu0 0.0
    %470 = vmatprep.subr.mxu0 0.0
    %471 = vmatpush1.msra.mxu0 0.0
    %472 = vmatprep.subr.mxu0 0.0
    %473 = vmatpush1.msra.mxu0 0.0
    %474 = vmatprep.subr.mxu0 0.0
    %475 = vmatpush1.msra.mxu0 0.0
    %476 = vmatprep.subr.mxu0 0.0
    %477 = vmatpush1.msra.mxu0 0.0
    %478 = vmatprep.subr.mxu0 0.0
    %479 = vmatpush1.msra.mxu0 0.0
    %480 = vmatprep.subr.mxu0 0.0
    %481 = vmatpush1.msra.mxu0 0.0
    %482 = vmatprep.subr.mxu0 0.0
    %483 = vmatpush1.msra.mxu0 0.0
    %484 = vmatprep.subr.mxu0 0.0
    %485 = vmatpush1.msra.mxu0 0.0
    %486 = vmatprep.subr.mxu0 0.0
    %487 = vmatpush1.msra.mxu0 0.0
    %488 = vmatprep.subr.mxu0 0.0
    %489 = vmatpush1.msra.mxu0 0.0
    %490 = vmatprep.subr.mxu0 0.0
    %491 = vmatpush1.msra.mxu0 0.0
    %492 = vmatprep.subr.mxu0 0.0
    %493 = vmatpush1.msra.mxu0 0.0
    %494 = vmatprep.subr.mxu0 0.0
    %495 = vmatpush1.msra.mxu0 0.0
    %496 = vmatprep.subr.mxu0 0.0
    %497 = vmatpush1.msra.mxu0 0.0
    %498 = vmatprep.subr.mxu0 0.0
    %499 = vmatpush1.msra.mxu0 0.0
    %500 = vmatprep.subr.mxu0 0.0
    %501 = vmatpush1.msra.mxu0 0.0
    %502 = vmatprep.subr.mxu0 0.0
    %503 = vmatpush1.msra.mxu0 0.0
    %504 = vmatprep.subr.mxu0 0.0
    %505 = vmatpush1.msra.mxu0 0.0
    %506 = vmatprep.subr.mxu0 0.0
    %507 = vmatpush1.msra.mxu0 0.0
    %508 = vmatprep.subr.mxu0 0.0
    %509 = vmatpush1.msra.mxu0 0.0
    %510 = vmatprep.subr.mxu0 0.0
    %511 = vmatpush1.msra.mxu0 0.0
    %512 = vmatprep.subr.mxu0 0.0
    %513 = vmatpush1.msra.mxu0 0.0
    %514 = vmatprep.subr.mxu0 0.0
    %515 = vmatpush1.msra.mxu0 0.0
    %516 = vmatprep.subr.mxu0 0.0
    %517 = vmatpush1.msra.mxu0 0.0
    %518 = vmatprep.subr.mxu0 0.0
    %519 = vmatpush1.msra.mxu0 0.0
    %520 = vmatprep.subr.mxu0 0.0
    %521 = vmatpush1.msra.mxu0 0.0
    %522 = vmatprep.subr.mxu0 0.0
    %523 = vmatpush1.msra.mxu0 0.0
    %524 = vmatprep.subr.mxu0 0.0
    %525 = vmatpush1.msra.mxu0 0.0
    %526 = vmatprep.mubr.f32.mxu0 0.0
    %v527 = vand.u32 %v58, 4294901760
    %528 = vmatmul.mubr.f32.gmra.mrb[0].mxu0 %v527
    %v529 = vpop.f32.mrb[0].mxu0
    %v530 = vadd.f32 %v456, %v529
    %v531 = vpop.f32.mrb[0].mxu0
    %v532 = vadd.f32 %v458, %v531
    %533 = vdwg.mxu0
    %v534 = vand.u32 %v67, 4294901760
    %535 = vmatprep.subr.mxu0 %v534
    %v536 = vand.u32 %v65, 4294901760
    %537 = vmatpush1.msra.mxu0 %v536
    %538 = vmatprep.subr.mxu0 0.0
    %539 = vmatpush1.msra.mxu0 0.0
    %540 = vmatprep.subr.mxu0 0.0
    %541 = vmatpush1.msra.mxu0 0.0
    %542 = vmatprep.subr.mxu0 0.0
    %543 = vmatpush1.msra.mxu0 0.0
    %544 = vmatprep.subr.mxu0 0.0
    %545 = vmatpush1.msra.mxu0 0.0
    %546 = vmatprep.subr.mxu0 0.0
    %547 = vmatpush1.msra.mxu0 0.0
    %548 = vmatprep.subr.mxu0 0.0
    %549 = vmatpush1.msra.mxu0 0.0
    %550 = vmatprep.subr.mxu0 0.0
    %551 = vmatpush1.msra.mxu0 0.0
    %552 = vmatprep.subr.mxu0 0.0
    %553 = vmatpush1.msra.mxu0 0.0
    %554 = vmatprep.subr.mxu0 0.0
    %555 = vmatpush1.msra.mxu0 0.0
    %556 = vmatprep.subr.mxu0 0.0
    %557 = vmatpush1.msra.mxu0 0.0
    %558 = vmatprep.subr.mxu0 0.0
    %559 = vmatpush1.msra.mxu0 0.0
    %560 = vmatprep.subr.mxu0 0.0
    %561 = vmatpush1.msra.mxu0 0.0
    %562 = vmatprep.subr.mxu0 0.0
    %563 = vmatpush1.msra.mxu0 0.0
    %564 = vmatprep.subr.mxu0 0.0
    %565 = vmatpush1.msra.mxu0 0.0
    %566 = vmatprep.subr.mxu0 0.0
    %567 = vmatpush1.msra.mxu0 0.0
    %568 = vmatprep.subr.mxu0 0.0
    %569 = vmatpush1.msra.mxu0 0.0
    %570 = vmatprep.subr.mxu0 0.0
    %571 = vmatpush1.msra.mxu0 0.0
    %572 = vmatprep.subr.mxu0 0.0
    %573 = vmatpush1.msra.mxu0 0.0
    %574 = vmatprep.subr.mxu0 0.0
    %575 = vmatpush1.msra.mxu0 0.0
    %576 = vmatprep.subr.mxu0 0.0
    %577 = vmatpush1.msra.mxu0 0.0
    %578 = vmatprep.subr.mxu0 0.0
    %579 = vmatpush1.msra.mxu0 0.0
    %580 = vmatprep.subr.mxu0 0.0
    %581 = vmatpush1.msra.mxu0 0.0
    %582 = vmatprep.subr.mxu0 0.0
    %583 = vmatpush1.msra.mxu0 0.0
    %584 = vmatprep.subr.mxu0 0.0
    %585 = vmatpush1.msra.mxu0 0.0
    %586 = vmatprep.subr.mxu0 0.0
    %587 = vmatpush1.msra.mxu0 0.0
    %588 = vmatprep.subr.mxu0 0.0
    %589 = vmatpush1.msra.mxu0 0.0
    %590 = vmatprep.subr.mxu0 0.0
    %591 = vmatpush1.msra.mxu0 0.0
    %592 = vmatprep.subr.mxu0 0.0
    %593 = vmatpush1.msra.mxu0 0.0
    %594 = vmatprep.subr.mxu0 0.0
    %595 = vmatpush1.msra.mxu0 0.0
    %596 = vmatprep.subr.mxu0 0.0
    %597 = vmatpush1.msra.mxu0 0.0
    %598 = vmatprep.subr.mxu0 0.0
    %599 = vmatpush1.msra.mxu0 0.0
    %600 = vmatprep.mubr.f32.mxu0 0.0
    %v601 = vand.u32 %v58, 4294901760
    %v602 = vsub.f32 %v58, %v601
    %v603 = vand.u32 %v602, 4294901760
    %v604 = vsub.f32 %v602, %v603
    %v605 = vand.u32 %v604, 4294901760
    %606 = vmatmul.mubr.f32.gmra.mrb[0].mxu0 %v605
    %v607 = vpop.f32.mrb[0].mxu0
    %v608 = vadd.f32 %v43, %v607
    %v609 = vpop.f32.mrb[0].mxu0
    %v610 = vadd.f32 %v47, %v609
    %611 = vdwg.mxu0
    %v612 = vand.u32 %v67, 4294901760
    %v613 = vsub.f32 %v67, %v612
    %v614 = vand.u32 %v613, 4294901760
    %v615 = vsub.f32 %v613, %v614
    %v616 = vand.u32 %v615, 4294901760
    %617 = vmatprep.subr.mxu0 %v616
    %v618 = vand.u32 %v65, 4294901760
    %v619 = vsub.f32 %v65, %v618
    %v620 = vand.u32 %v619, 4294901760
    %v621 = vsub.f32 %v619, %v620
    %v622 = vand.u32 %v621, 4294901760
    %623 = vmatpush1.msra.mxu0 %v622
    %624 = vmatprep.subr.mxu0 0.0
    %625 = vmatpush1.msra.mxu0 0.0
    %626 = vmatprep.subr.mxu0 0.0
    %627 = vmatpush1.msra.mxu0 0.0
    %628 = vmatprep.subr.mxu0 0.0
    %629 = vmatpush1.msra.mxu0 0.0
    %630 = vmatprep.subr.mxu0 0.0
    %631 = vmatpush1.msra.mxu0 0.0
    %632 = vmatprep.subr.mxu0 0.0
    %633 = vmatpush1.msra.mxu0 0.0
    %634 = vmatprep.subr.mxu0 0.0
    %635 = vmatpush1.msra.mxu0 0.0
    %636 = vmatprep.subr.mxu0 0.0
    %637 = vmatpush1.msra.mxu0 0.0
    %638 = vmatprep.subr.mxu0 0.0
    %639 = vmatpush1.msra.mxu0 0.0
    %640 = vmatprep.subr.mxu0 0.0
    %641 = vmatpush1.msra.mxu0 0.0
    %642 = vmatprep.subr.mxu0 0.0
    %643 = vmatpush1.msra.mxu0 0.0
    %644 = vmatprep.subr.mxu0 0.0
    %645 = vmatpush1.msra.mxu0 0.0
    %646 = vmatprep.subr.mxu0 0.0
    %647 = vmatpush1.msra.mxu0 0.0
    %648 = vmatprep.subr.mxu0 0.0
    %649 = vmatpush1.msra.mxu0 0.0
    %650 = vmatprep.subr.mxu0 0.0
    %651 = vmatpush1.msra.mxu0 0.0
    %652 = vmatprep.subr.mxu0 0.0
    %653 = vmatpush1.msra.mxu0 0.0
    %654 = vmatprep.subr.mxu0 0.0
    %655 = vmatpush1.msra.mxu0 0.0
    %656 = vmatprep.subr.mxu0 0.0
    %657 = vmatpush1.msra.mxu0 0.0
    %658 = vmatprep.subr.mxu0 0.0
    %659 = vmatpush1.msra.mxu0 0.0
    %660 = vmatprep.subr.mxu0 0.0
    %661 = vmatpush1.msra.mxu0 0.0
    %662 = vmatprep.subr.mxu0 0.0
    %663 = vmatpush1.msra.mxu0 0.0
    %664 = vmatprep.subr.mxu0 0.0
    %665 = vmatpush1.msra.mxu0 0.0
    %666 = vmatprep.subr.mxu0 0.0
    %667 = vmatpush1.msra.mxu0 0.0
    %668 = vmatprep.subr.mxu0 0.0
    %669 = vmatpush1.msra.mxu0 0.0
    %670 = vmatprep.subr.mxu0 0.0
    %671 = vmatpush1.msra.mxu0 0.0
    %672 = vmatprep.subr.mxu0 0.0
    %673 = vmatpush1.msra.mxu0 0.0
    %674 = vmatprep.subr.mxu0 0.0
    %675 = vmatpush1.msra.mxu0 0.0
    %676 = vmatprep.subr.mxu0 0.0
    %677 = vmatpush1.msra.mxu0 0.0
    %678 = vmatprep.subr.mxu0 0.0
    %679 = vmatpush1.msra.mxu0 0.0
    %680 = vmatprep.subr.mxu0 0.0
    %681 = vmatpush1.msra.mxu0 0.0
    %682 = vmatprep.subr.mxu0 0.0
    %683 = vmatpush1.msra.mxu0 0.0
    %684 = vmatprep.subr.mxu0 0.0
    %685 = vmatpush1.msra.mxu0 0.0
    %686 = vmatprep.mubr.f32.mxu0 0.0
    %v687 = vand.u32 %v58, 4294901760
    %688 = vmatmul.mubr.f32.gmra.mrb[0].mxu0 %v687
    %v689 = vpop.f32.mrb[0].mxu0
    %v690 = vadd.f32 %v608, %v689
    %v691 = vpop.f32.mrb[0].mxu0
    %v692 = vadd.f32 %v610, %v691
    %693 = vdwg.mxu0
    %v694 = vand.u32 %v67, 4294901760
    %v695 = vsub.f32 %v67, %v694
    %696 = vmatprep.subr.mxu0 %v695
    %v697 = vand.u32 %v65, 4294901760
    %v698 = vsub.f32 %v65, %v697
    %699 = vmatpush1.msra.mxu0 %v698
    %700 = vmatprep.subr.mxu0 0.0
    %701 = vmatpush1.msra.mxu0 0.0
    %702 = vmatprep.subr.mxu0 0.0
    %703 = vmatpush1.msra.mxu0 0.0
    %704 = vmatprep.subr.mxu0 0.0
    %705 = vmatpush1.msra.mxu0 0.0
    %706 = vmatprep.subr.mxu0 0.0
    %707 = vmatpush1.msra.mxu0 0.0
    %708 = vmatprep.subr.mxu0 0.0
    %709 = vmatpush1.msra.mxu0 0.0
    %710 = vmatprep.subr.mxu0 0.0
    %711 = vmatpush1.msra.mxu0 0.0
    %712 = vmatprep.subr.mxu0 0.0
    %713 = vmatpush1.msra.mxu0 0.0
    %714 = vmatprep.subr.mxu0 0.0
    %715 = vmatpush1.msra.mxu0 0.0
    %716 = vmatprep.subr.mxu0 0.0
    %717 = vmatpush1.msra.mxu0 0.0
    %718 = vmatprep.subr.mxu0 0.0
    %719 = vmatpush1.msra.mxu0 0.0
    %720 = vmatprep.subr.mxu0 0.0
    %721 = vmatpush1.msra.mxu0 0.0
    %722 = vmatprep.subr.mxu0 0.0
    %723 = vmatpush1.msra.mxu0 0.0
    %724 = vmatprep.subr.mxu0 0.0
    %725 = vmatpush1.msra.mxu0 0.0
    %726 = vmatprep.subr.mxu0 0.0
    %727 = vmatpush1.msra.mxu0 0.0
    %728 = vmatprep.subr.mxu0 0.0
    %729 = vmatpush1.msra.mxu0 0.0
    %730 = vmatprep.subr.mxu0 0.0
    %731 = vmatpush1.msra.mxu0 0.0
    %732 = vmatprep.subr.mxu0 0.0
    %733 = vmatpush1.msra.mxu0 0.0
    %734 = vmatprep.subr.mxu0 0.0
    %735 = vmatpush1.msra.mxu0 0.0
    %736 = vmatprep.subr.mxu0 0.0
    %737 = vmatpush1.msra.mxu0 0.0
    %738 = vmatprep.subr.mxu0 0.0
    %739 = vmatpush1.msra.mxu0 0.0
    %740 = vmatprep.subr.mxu0 0.0
    %741 = vmatpush1.msra.mxu0 0.0
    %742 = vmatprep.subr.mxu0 0.0
    %743 = vmatpush1.msra.mxu0 0.0
    %744 = vmatprep.subr.mxu0 0.0
    %745 = vmatpush1.msra.mxu0 0.0
    %746 = vmatprep.subr.mxu0 0.0
    %747 = vmatpush1.msra.mxu0 0.0
    %748 = vmatprep.subr.mxu0 0.0
    %749 = vmatpush1.msra.mxu0 0.0
    %750 = vmatprep.subr.mxu0 0.0
    %751 = vmatpush1.msra.mxu0 0.0
    %752 = vmatprep.subr.mxu0 0.0
    %753 = vmatpush1.msra.mxu0 0.0
    %754 = vmatprep.subr.mxu0 0.0
    %755 = vmatpush1.msra.mxu0 0.0
    %756 = vmatprep.subr.mxu0 0.0
    %757 = vmatpush1.msra.mxu0 0.0
    %758 = vmatprep.subr.mxu0 0.0
    %759 = vmatpush1.msra.mxu0 0.0
    %760 = vmatprep.subr.mxu0 0.0
    %761 = vmatpush1.msra.mxu0 0.0
    %762 = vmatprep.mubr.f32.mxu0 0.0
    %v763 = vand.u32 %v58, 4294901760
    %v764 = vsub.f32 %v58, %v763
    %765 = vmatmul.mubr.f32.gmra.mrb[0].mxu0 %v764
    %v766 = vpop.f32.mrb[0].mxu0
    %v767 = vadd.f32 %v690, %v766
    %v768 = vpop.f32.mrb[0].mxu0
    %v769 = vadd.f32 %v692, %v768
    %770 = vdwg.mxu0
    %v771 = vand.u32 %v67, 4294901760
    %772 = vmatprep.subr.mxu0 %v771
    %v773 = vand.u32 %v65, 4294901760
    %774 = vmatpush1.msra.mxu0 %v773
    %775 = vmatprep.subr.mxu0 0.0
    %776 = vmatpush1.msra.mxu0 0.0
    %777 = vmatprep.subr.mxu0 0.0
    %778 = vmatpush1.msra.mxu0 0.0
    %779 = vmatprep.subr.mxu0 0.0
    %780 = vmatpush1.msra.mxu0 0.0
    %781 = vmatprep.subr.mxu0 0.0
    %782 = vmatpush1.msra.mxu0 0.0
    %783 = vmatprep.subr.mxu0 0.0
    %784 = vmatpush1.msra.mxu0 0.0
    %785 = vmatprep.subr.mxu0 0.0
    %786 = vmatpush1.msra.mxu0 0.0
    %787 = vmatprep.subr.mxu0 0.0
    %788 = vmatpush1.msra.mxu0 0.0
    %789 = vmatprep.subr.mxu0 0.0
    %790 = vmatpush1.msra.mxu0 0.0
    %791 = vmatprep.subr.mxu0 0.0
    %792 = vmatpush1.msra.mxu0 0.0
    %793 = vmatprep.subr.mxu0 0.0
    %794 = vmatpush1.msra.mxu0 0.0
    %795 = vmatprep.subr.mxu0 0.0
    %796 = vmatpush1.msra.mxu0 0.0
    %797 = vmatprep.subr.mxu0 0.0
    %798 = vmatpush1.msra.mxu0 0.0
    %799 = vmatprep.subr.mxu0 0.0
    %800 = vmatpush1.msra.mxu0 0.0
    %801 = vmatprep.subr.mxu0 0.0
    %802 = vmatpush1.msra.mxu0 0.0
    %803 = vmatprep.subr.mxu0 0.0
    %804 = vmatpush1.msra.mxu0 0.0
    %805 = vmatprep.subr.mxu0 0.0
    %806 = vmatpush1.msra.mxu0 0.0
    %807 = vmatprep.subr.mxu0 0.0
    %808 = vmatpush1.msra.mxu0 0.0
    %809 = vmatprep.subr.mxu0 0.0
    %810 = vmatpush1.msra.mxu0 0.0
    %811 = vmatprep.subr.mxu0 0.0
    %812 = vmatpush1.msra.mxu0 0.0
    %813 = vmatprep.subr.mxu0 0.0
    %814 = vmatpush1.msra.mxu0 0.0
    %815 = vmatprep.subr.mxu0 0.0
    %816 = vmatpush1.msra.mxu0 0.0
    %817 = vmatprep.subr.mxu0 0.0
    %818 = vmatpush1.msra.mxu0 0.0
    %819 = vmatprep.subr.mxu0 0.0
    %820 = vmatpush1.msra.mxu0 0.0
    %821 = vmatprep.subr.mxu0 0.0
    %822 = vmatpush1.msra.mxu0 0.0
    %823 = vmatprep.subr.mxu0 0.0
    %824 = vmatpush1.msra.mxu0 0.0
    %825 = vmatprep.subr.mxu0 0.0
    %826 = vmatpush1.msra.mxu0 0.0
    %827 = vmatprep.subr.mxu0 0.0
    %828 = vmatpush1.msra.mxu0 0.0
    %829 = vmatprep.subr.mxu0 0.0
    %830 = vmatpush1.msra.mxu0 0.0
    %831 = vmatprep.subr.mxu0 0.0
    %832 = vmatpush1.msra.mxu0 0.0
    %833 = vmatprep.subr.mxu0 0.0
    %834 = vmatpush1.msra.mxu0 0.0
    %835 = vmatprep.subr.mxu0 0.0
    %836 = vmatpush1.msra.mxu0 0.0
    %837 = vmatprep.mubr.f32.mxu0 0.0
    %v838 = vand.u32 %v58, 4294901760
    %v839 = vsub.f32 %v58, %v838
    %v840 = vand.u32 %v839, 4294901760
    %841 = vmatmul.mubr.f32.gmra.mrb[0].mxu0 %v840
    %v842 = vpop.f32.mrb[0].mxu0
    %v843 = vadd.f32 %v767, %v842
    %v844 = vpop.f32.mrb[0].mxu0
    %v845 = vadd.f32 %v769, %v844
    %846 = vdwg.mxu0
    %v847 = vand.u32 %v67, 4294901760
    %v848 = vsub.f32 %v67, %v847
    %v849 = vand.u32 %v848, 4294901760
    %850 = vmatprep.subr.mxu0 %v849
    %v851 = vand.u32 %v65, 4294901760
    %v852 = vsub.f32 %v65, %v851
    %v853 = vand.u32 %v852, 4294901760
    %854 = vmatpush1.msra.mxu0 %v853
    %855 = vmatprep.subr.mxu0 0.0
    %856 = vmatpush1.msra.mxu0 0.0
    %857 = vmatprep.subr.mxu0 0.0
    %858 = vmatpush1.msra.mxu0 0.0
    %859 = vmatprep.subr.mxu0 0.0
    %860 = vmatpush1.msra.mxu0 0.0
    %861 = vmatprep.subr.mxu0 0.0
    %862 = vmatpush1.msra.mxu0 0.0
    %863 = vmatprep.subr.mxu0 0.0
    %864 = vmatpush1.msra.mxu0 0.0
    %865 = vmatprep.subr.mxu0 0.0
    %866 = vmatpush1.msra.mxu0 0.0
    %867 = vmatprep.subr.mxu0 0.0
    %868 = vmatpush1.msra.mxu0 0.0
    %869 = vmatprep.subr.mxu0 0.0
    %870 = vmatpush1.msra.mxu0 0.0
    %871 = vmatprep.subr.mxu0 0.0
    %872 = vmatpush1.msra.mxu0 0.0
    %873 = vmatprep.subr.mxu0 0.0
    %874 = vmatpush1.msra.mxu0 0.0
    %875 = vmatprep.subr.mxu0 0.0
    %876 = vmatpush1.msra.mxu0 0.0
    %877 = vmatprep.subr.mxu0 0.0
    %878 = vmatpush1.msra.mxu0 0.0
    %879 = vmatprep.subr.mxu0 0.0
    %880 = vmatpush1.msra.mxu0 0.0
    %881 = vmatprep.subr.mxu0 0.0
    %882 = vmatpush1.msra.mxu0 0.0
    %883 = vmatprep.subr.mxu0 0.0
    %884 = vmatpush1.msra.mxu0 0.0
    %885 = vmatprep.subr.mxu0 0.0
    %886 = vmatpush1.msra.mxu0 0.0
    %887 = vmatprep.subr.mxu0 0.0
    %888 = vmatpush1.msra.mxu0 0.0
    %889 = vmatprep.subr.mxu0 0.0
    %890 = vmatpush1.msra.mxu0 0.0
    %891 = vmatprep.subr.mxu0 0.0
    %892 = vmatpush1.msra.mxu0 0.0
    %893 = vmatprep.subr.mxu0 0.0
    %894 = vmatpush1.msra.mxu0 0.0
    %895 = vmatprep.subr.mxu0 0.0
    %896 = vmatpush1.msra.mxu0 0.0
    %897 = vmatprep.subr.mxu0 0.0
    %898 = vmatpush1.msra.mxu0 0.0
    %899 = vmatprep.subr.mxu0 0.0
    %900 = vmatpush1.msra.mxu0 0.0
    %901 = vmatprep.subr.mxu0 0.0
    %902 = vmatpush1.msra.mxu0 0.0
    %903 = vmatprep.subr.mxu0 0.0
    %904 = vmatpush1.msra.mxu0 0.0
    %905 = vmatprep.subr.mxu0 0.0
    %906 = vmatpush1.msra.mxu0 0.0
    %907 = vmatprep.subr.mxu0 0.0
    %908 = vmatpush1.msra.mxu0 0.0
    %909 = vmatprep.subr.mxu0 0.0
    %910 = vmatpush1.msra.mxu0 0.0
    %911 = vmatprep.subr.mxu0 0.0
    %912 = vmatpush1.msra.mxu0 0.0
    %913 = vmatprep.subr.mxu0 0.0
    %914 = vmatpush1.msra.mxu0 0.0
    %915 = vmatprep.subr.mxu0 0.0
    %916 = vmatpush1.msra.mxu0 0.0
    %917 = vmatprep.mubr.f32.mxu0 0.0
    %v918 = vand.u32 %v58, 4294901760
    %919 = vmatmul.mubr.f32.gmra.mrb[0].mxu0 %v918
    %v920 = vpop.f32.mrb[0].mxu0
    %v921 = vadd.f32 %v843, %v920
    %v922 = vpop.f32.mrb[0].mxu0
    %v923 = vadd.f32 %v845, %v922
    %924 = vdwg.mxu0
    %v925 = vand.u32 %v67, 4294901760
    %926 = vmatprep.subr.mxu0 %v925
    %v927 = vand.u32 %v65, 4294901760
    %928 = vmatpush1.msra.mxu0 %v927
    %929 = vmatprep.subr.mxu0 0.0
    %930 = vmatpush1.msra.mxu0 0.0
    %931 = vmatprep.subr.mxu0 0.0
    %932 = vmatpush1.msra.mxu0 0.0
    %933 = vmatprep.subr.mxu0 0.0
    %934 = vmatpush1.msra.mxu0 0.0
    %935 = vmatprep.subr.mxu0 0.0
    %936 = vmatpush1.msra.mxu0 0.0
    %937 = vmatprep.subr.mxu0 0.0
    %938 = vmatpush1.msra.mxu0 0.0
    %939 = vmatprep.subr.mxu0 0.0
    %940 = vmatpush1.msra.mxu0 0.0
    %941 = vmatprep.subr.mxu0 0.0
    %942 = vmatpush1.msra.mxu0 0.0
    %943 = vmatprep.subr.mxu0 0.0
    %944 = vmatpush1.msra.mxu0 0.0
    %945 = vmatprep.subr.mxu0 0.0
    %946 = vmatpush1.msra.mxu0 0.0
    %947 = vmatprep.subr.mxu0 0.0
    %948 = vmatpush1.msra.mxu0 0.0
    %949 = vmatprep.subr.mxu0 0.0
    %950 = vmatpush1.msra.mxu0 0.0
    %951 = vmatprep.subr.mxu0 0.0
    %952 = vmatpush1.msra.mxu0 0.0
    %953 = vmatprep.subr.mxu0 0.0
    %954 = vmatpush1.msra.mxu0 0.0
    %955 = vmatprep.subr.mxu0 0.0
    %956 = vmatpush1.msra.mxu0 0.0
    %957 = vmatprep.subr.mxu0 0.0
    %958 = vmatpush1.msra.mxu0 0.0
    %959 = vmatprep.subr.mxu0 0.0
    %960 = vmatpush1.msra.mxu0 0.0
    %961 = vmatprep.subr.mxu0 0.0
    %962 = vmatpush1.msra.mxu0 0.0
    %963 = vmatprep.subr.mxu0 0.0
    %964 = vmatpush1.msra.mxu0 0.0
    %965 = vmatprep.subr.mxu0 0.0
    %966 = vmatpush1.msra.mxu0 0.0
    %967 = vmatprep.subr.mxu0 0.0
    %968 = vmatpush1.msra.mxu0 0.0
    %969 = vmatprep.subr.mxu0 0.0
    %970 = vmatpush1.msra.mxu0 0.0
    %971 = vmatprep.subr.mxu0 0.0
    %972 = vmatpush1.msra.mxu0 0.0
    %973 = vmatprep.subr.mxu0 0.0
    %974 = vmatpush1.msra.mxu0 0.0
    %975 = vmatprep.subr.mxu0 0.0
    %976 = vmatpush1.msra.mxu0 0.0
    %977 = vmatprep.subr.mxu0 0.0
    %978 = vmatpush1.msra.mxu0 0.0
    %979 = vmatprep.subr.mxu0 0.0
    %980 = vmatpush1.msra.mxu0 0.0
    %981 = vmatprep.subr.mxu0 0.0
    %982 = vmatpush1.msra.mxu0 0.0
    %983 = vmatprep.subr.mxu0 0.0
    %984 = vmatpush1.msra.mxu0 0.0
    %985 = vmatprep.subr.mxu0 0.0
    %986 = vmatpush1.msra.mxu0 0.0
    %987 = vmatprep.subr.mxu0 0.0
    %988 = vmatpush1.msra.mxu0 0.0
    %989 = vmatprep.subr.mxu0 0.0
    %990 = vmatpush1.msra.mxu0 0.0
    %991 = vmatprep.mubr.f32.mxu0 0.0
    %v992 = vand.u32 %v58, 4294901760
    %993 = vmatmul.mubr.f32.gmra.mrb[0].mxu0 %v992
    %v994 = vpop.f32.mrb[0].mxu0
    %v995 = vadd.f32 %v921, %v994
    %v996 = vpop.f32.mrb[0].mxu0
    %v997 = vadd.f32 %v923, %v996
    %998 = vdwg.mxu0
    %v999 = vand.u32 2147483647, %v530
    %vm1000 = vcmp.le.f32.partialorder %v999, 0.7853982
    %vm1001 = vcmp.lt.s32.totalorder %v530, 0
    %v1002 = vand.u32 %v530, 2139095040
    %v1003 = vshrl.u32 %v1002, 23
    %v1004 = vsub.s32 %v1003, 127
    %v1005 = vand.u32 2147483647, %v530
    %v1006 = vand.u32 %v1005, 8388607
    %v1007 = vor.u32 %v1006, 8388608
    %v1008 = vsub.s32 0, %v1007
    %v1009 = vadd.s32 %v1004, 1
    %vm1010 = vcmp.gt.s32.totalorder %v1009, 0
    %v1011 = vsel %vm1010, %v1009, 0
    %v1012 = vshrl.u32 %v1011, 5
    %v1013 = vand.u32 %v1011, 31
    %v1014 = vsub.s32 32, %v1013
    %v1015 = vshrl.u32 683565275, %v1014
    %v1016 = vshll.u32 683565275, %v1013
    %v1017 = vshrl.u32 2475754826, %v1014
    %v1018 = vor.u32 %v1016, %v1017
    %v1019 = vshll.u32 2475754826, %v1013
    %v1020 = vshrl.u32 2131351028, %v1014
    %v1021 = vor.u32 %v1019, %v1020
    %v1022 = vshll.u32 2131351028, %v1013
    %v1023 = vshrl.u32 2102212464, %v1014
    %v1024 = vor.u32 %v1022, %v1023
    %v1025 = vshll.u32 2102212464, %v1013
    %v1026 = vshrl.u32 920167782, %v1014
    %v1027 = vor.u32 %v1025, %v1026
    %v1028 = vshll.u32 920167782, %v1013
    %v1029 = vshrl.u32 1326507024, %v1014
    %v1030 = vor.u32 %v1028, %v1029
    %vm1031 = vcmp.lt.s32.totalorder %v1012, 1
    %vm1032 = vcmp.lt.s32.totalorder %v1012, 2
    %vm1033 = vcmp.lt.s32.totalorder %v1012, 3
    %vm1034 = vcmp.lt.s32.totalorder %v1012, 4
    %v1035 = vsel %vm1031, %v1015, %v1018
    %v1036 = vsel %vm1034, %v1024, 2102212464
    %v1037 = vsel %vm1033, %v1021, %v1036
    %v1038 = vsel %vm1032, %v1035, %v1037
    %v1039 = vsel %vm1031, %v1018, %v1021
    %v1040 = vsel %vm1034, %v1027, 920167782
    %v1041 = vsel %vm1033, %v1024, %v1040
    %v1042 = vsel %vm1032, %v1039, %v1041
    %v1043 = vsel %vm1031, %v1021, %v1024
    %v1044 = vsel %vm1034, %v1030, 1326507024
    %v1045 = vsel %vm1033, %v1027, %v1044
    %v1046 = vsel %vm1032, %v1043, %v1045
    %v1047 = vshll.u32 %v1007, 8
    %v1048 = vmul.u32.u64.compose %v1047, %v1046
    %v1049 = vextract.low.u32 %v1048
    %v1050 = vextract.high.u32 %v1048
    %v1051 = vmul.u32.u64.compose %v1047, %v1042
    %v1052 = vextract.low.u32 %v1051
    %v1053 = vextract.high.u32 %v1051
    %v1054 = vmul.u32 %v1047, %v1038
    %v1055 = vadd.s32 %v1050, %v1052
    %vm1056 = vc.u32 %v1050, %v1052
    %v1057 = vadd.s32 %v1053, 1
    %v1058 = vsel %vm1056, %v1057, %v1053
    %v1059 = vadd.s32 %v1054, %v1058
    %v1060 = vadd.s32 %v1059, 536870912
    %v1061 = vshrl.u32 %v1060, 30
    %v1062 = vshll.u32 %v1061, 30
    %v1063 = vsub.s32 %v1059, %v1062
    %vm1064 = vcmp.lt.s32.totalorder %v1063, 0
    %v1065 = vsub.s32 0, %v1063
    %v1066 = vsel %vm1064, %v1065, %v1063
    %v1067 = vclz %v1066
    %v1068 = vsub.s32 %v1067, 2
    %vm1069 = vcmp.gt.s32.totalorder 0, %v1068
    %v1070 = vsel %vm1069, 0, %v1068
    %v1071 = vsub.s32 32, %v1070
    %v1072 = vshll.u32 %v1063, %v1070
    %v1073 = vshrl.u32 %v1055, %v1071
    %v1074 = vor.u32 %v1072, %v1073
    %v1075 = vsub.s32 4294967266, %v1070
    %v1076 = vadd.s32 %v1075, 127
    %v1077 = vshll.u32 %v1076, 23
    %v1078 = vor.u32 4788187, %v1077
    %v1079 = vand.u32 2147483647, %v1078
    %v1081 = vcvt.s32.f32 %v1074
    %v1082 = vmul.f32 %v1081, %v1079
    %v1083 = vxor.u32 %v1082, 2147483648
    %v1084 = vsel %vm1001, %v1083, %v1082
    %v1085 = vsub.s32 4, %v1061
    %v1086 = vsel %vm1001, %v1085, %v1061
    %v1087 = vsel %vm1000, %v530, %v1084
    %v1088 = vsel %vm1000, 0, %v1086
    %v1089 = vcosq.f32.pop %v1087
    %v1090 = vsinq.f32.pop %v1087
    %vm1091 = vweird.f32 %v530
    %v1092 = vadd.s32 %v1088, 3
    %v1093 = vand.u32 %v1092, 3
    %vm1094 = vcmp.lt.s32.totalorder %v1093, 2
    %vm1095 = vcmp.eq.s32.totalorder %v1093, 0
    %v1096 = vxor.u32 %v1090, 2147483648
    %v1097 = vsel %vm1095, %v1089, %v1096
    %vm1098 = vcmp.eq.s32.totalorder %v1093, 2
    %v1099 = vxor.u32 %v1089, 2147483648
    %v1100 = vsel %vm1098, %v1099, %v1090
    %v1101 = vsel %vm1094, %v1097, %v1100
    %v1102 = vsel %vm1091, nan, %v1101
    %v1103 = vand.u32 2147483647, %v532
    %vm1104 = vcmp.le.f32.partialorder %v1103, 0.7853982
    %vm1105 = vcmp.lt.s32.totalorder %v532, 0
    %v1106 = vand.u32 %v532, 2139095040
    %v1107 = vshrl.u32 %v1106, 23
    %v1108 = vsub.s32 %v1107, 127
    %v1109 = vand.u32 2147483647, %v532
    %v1110 = vand.u32 %v1109, 8388607
    %v1111 = vor.u32 %v1110, 8388608
    %v1112 = vsub.s32 0, %v1111
    %v1113 = vadd.s32 %v1108, 1
    %vm1114 = vcmp.gt.s32.totalorder %v1113, 0
    %v1115 = vsel %vm1114, %v1113, 0
    %v1116 = vshrl.u32 %v1115, 5
    %v1117 = vand.u32 %v1115, 31
    %v1118 = vsub.s32 32, %v1117
    %v1119 = vshrl.u32 683565275, %v1118
    %v1120 = vshll.u32 683565275, %v1117
    %v1121 = vshrl.u32 2475754826, %v1118
    %v1122 = vor.u32 %v1120, %v1121
    %v1123 = vshll.u32 2475754826, %v1117
    %v1124 = vshrl.u32 2131351028, %v1118
    %v1125 = vor.u32 %v1123, %v1124
    %v1126 = vshll.u32 2131351028, %v1117
    %v1127 = vshrl.u32 2102212464, %v1118
    %v1128 = vor.u32 %v1126, %v1127
    %v1129 = vshll.u32 2102212464, %v1117
    %v1130 = vshrl.u32 920167782, %v1118
    %v1131 = vor.u32 %v1129, %v1130
    %v1132 = vshll.u32 920167782, %v1117
    %v1133 = vshrl.u32 1326507024, %v1118
    %v1134 = vor.u32 %v1132, %v1133
    %vm1135 = vcmp.lt.s32.totalorder %v1116, 1
    %vm1136 = vcmp.lt.s32.totalorder %v1116, 2
    %vm1137 = vcmp.lt.s32.totalorder %v1116, 3
    %vm1138 = vcmp.lt.s32.totalorder %v1116, 4
    %v1139 = vsel %vm1135, %v1119, %v1122
    %v1140 = vsel %vm1138, %v1128, 2102212464
    %v1141 = vsel %vm1137, %v1125, %v1140
    %v1142 = vsel %vm1136, %v1139, %v1141
    %v1143 = vsel %vm1135, %v1122, %v1125
    %v1144 = vsel %vm1138, %v1131, 920167782
    %v1145 = vsel %vm1137, %v1128, %v1144
    %v1146 = vsel %vm1136, %v1143, %v1145
    %v1147 = vsel %vm1135, %v1125, %v1128
    %v1148 = vsel %vm1138, %v1134, 1326507024
    %v1149 = vsel %vm1137, %v1131, %v1148
    %v1150 = vsel %vm1136, %v1147, %v1149
    %v1151 = vshll.u32 %v1111, 8
    %v1152 = vmul.u32.u64.compose %v1151, %v1150
    %v1153 = vextract.low.u32 %v1152
    %v1154 = vextract.high.u32 %v1152
    %v1155 = vmul.u32.u64.compose %v1151, %v1146
    %v1156 = vextract.low.u32 %v1155
    %v1157 = vextract.high.u32 %v1155
    %v1158 = vmul.u32 %v1151, %v1142
    %v1159 = vadd.s32 %v1154, %v1156
    %vm1160 = vc.u32 %v1154, %v1156
    %v1161 = vadd.s32 %v1157, 1
    %v1162 = vsel %vm1160, %v1161, %v1157
    %v1163 = vadd.s32 %v1158, %v1162
    %v1164 = vadd.s32 %v1163, 536870912
    %v1165 = vshrl.u32 %v1164, 30
    %v1166 = vshll.u32 %v1165, 30
    %v1167 = vsub.s32 %v1163, %v1166
    %vm1168 = vcmp.lt.s32.totalorder %v1167, 0
    %v1169 = vsub.s32 0, %v1167
    %v1170 = vsel %vm1168, %v1169, %v1167
    %v1171 = vclz %v1170
    %v1172 = vsub.s32 %v1171, 2
    %vm1173 = vcmp.gt.s32.totalorder 0, %v1172
    %v1174 = vsel %vm1173, 0, %v1172
    %v1175 = vsub.s32 32, %v1174
    %v1176 = vshll.u32 %v1167, %v1174
    %v1177 = vshrl.u32 %v1159, %v1175
    %v1178 = vor.u32 %v1176, %v1177
    %v1179 = vsub.s32 4294967266, %v1174
    %v1180 = vadd.s32 %v1179, 127
    %v1181 = vshll.u32 %v1180, 23
    %v1182 = vor.u32 4788187, %v1181
    %v1183 = vand.u32 2147483647, %v1182
    %v1185 = vcvt.s32.f32 %v1178
    %v1186 = vmul.f32 %v1185, %v1183
    %v1187 = vxor.u32 %v1186, 2147483648
    %v1188 = vsel %vm1105, %v1187, %v1186
    %v1189 = vsub.s32 4, %v1165
    %v1190 = vsel %vm1105, %v1189, %v1165
    %v1191 = vsel %vm1104, %v532, %v1188
    %v1192 = vsel %vm1104, 0, %v1190
    %v1193 = vcosq.f32.pop %v1191
    %v1194 = vsinq.f32.pop %v1191
    %vm1195 = vweird.f32 %v532
    %v1196 = vadd.s32 %v1192, 3
    %v1197 = vand.u32 %v1196, 3
    %vm1198 = vcmp.lt.s32.totalorder %v1197, 2
    %vm1199 = vcmp.eq.s32.totalorder %v1197, 0
    %v1200 = vxor.u32 %v1194, 2147483648
    %v1201 = vsel %vm1199, %v1193, %v1200
    %vm1202 = vcmp.eq.s32.totalorder %v1197, 2
    %v1203 = vxor.u32 %v1193, 2147483648
    %v1204 = vsel %vm1202, %v1203, %v1194
    %v1205 = vsel %vm1198, %v1201, %v1204
    %v1206 = vsel %vm1195, nan, %v1205
    %v1207 = vand.u32 2147483647, %v995
    %vm1208 = vcmp.le.f32.partialorder %v1207, 0.7853982
    %vm1209 = vcmp.lt.s32.totalorder %v995, 0
    %v1210 = vand.u32 %v995, 2139095040
    %v1211 = vshrl.u32 %v1210, 23
    %v1212 = vsub.s32 %v1211, 127
    %v1213 = vand.u32 2147483647, %v995
    %v1214 = vand.u32 %v1213, 8388607
    %v1215 = vor.u32 %v1214, 8388608
    %v1216 = vsub.s32 0, %v1215
    %v1217 = vadd.s32 %v1212, 1
    %vm1218 = vcmp.gt.s32.totalorder %v1217, 0
    %v1219 = vsel %vm1218, %v1217, 0
    %v1220 = vshrl.u32 %v1219, 5
    %v1221 = vand.u32 %v1219, 31
    %v1222 = vsub.s32 32, %v1221
    %v1223 = vshrl.u32 683565275, %v1222
    %v1224 = vshll.u32 683565275, %v1221
    %v1225 = vshrl.u32 2475754826, %v1222
    %v1226 = vor.u32 %v1224, %v1225
    %v1227 = vshll.u32 2475754826, %v1221
    %v1228 = vshrl.u32 2131351028, %v1222
    %v1229 = vor.u32 %v1227, %v1228
    %v1230 = vshll.u32 2131351028, %v1221
    %v1231 = vshrl.u32 2102212464, %v1222
    %v1232 = vor.u32 %v1230, %v1231
    %v1233 = vshll.u32 2102212464, %v1221
    %v1234 = vshrl.u32 920167782, %v1222
    %v1235 = vor.u32 %v1233, %v1234
    %v1236 = vshll.u32 920167782, %v1221
    %v1237 = vshrl.u32 1326507024, %v1222
    %v1238 = vor.u32 %v1236, %v1237
    %vm1239 = vcmp.lt.s32.totalorder %v1220, 1
    %vm1240 = vcmp.lt.s32.totalorder %v1220, 2
    %vm1241 = vcmp.lt.s32.totalorder %v1220, 3
    %vm1242 = vcmp.lt.s32.totalorder %v1220, 4
    %v1243 = vsel %vm1239, %v1223, %v1226
    %v1244 = vsel %vm1242, %v1232, 2102212464
    %v1245 = vsel %vm1241, %v1229, %v1244
    %v1246 = vsel %vm1240, %v1243, %v1245
    %v1247 = vsel %vm1239, %v1226, %v1229
    %v1248 = vsel %vm1242, %v1235, 920167782
    %v1249 = vsel %vm1241, %v1232, %v1248
    %v1250 = vsel %vm1240, %v1247, %v1249
    %v1251 = vsel %vm1239, %v1229, %v1232
    %v1252 = vsel %vm1242, %v1238, 1326507024
    %v1253 = vsel %vm1241, %v1235, %v1252
    %v1254 = vsel %vm1240, %v1251, %v1253
    %v1255 = vshll.u32 %v1215, 8
    %v1256 = vmul.u32.u64.compose %v1255, %v1254
    %v1257 = vextract.low.u32 %v1256
    %v1258 = vextract.high.u32 %v1256
    %v1259 = vmul.u32.u64.compose %v1255, %v1250
    %v1260 = vextract.low.u32 %v1259
    %v1261 = vextract.high.u32 %v1259
    %v1262 = vmul.u32 %v1255, %v1246
    %v1263 = vadd.s32 %v1258, %v1260
    %vm1264 = vc.u32 %v1258, %v1260
    %v1265 = vadd.s32 %v1261, 1
    %v1266 = vsel %vm1264, %v1265, %v1261
    %v1267 = vadd.s32 %v1262, %v1266
    %v1268 = vadd.s32 %v1267, 536870912
    %v1269 = vshrl.u32 %v1268, 30
    %v1270 = vshll.u32 %v1269, 30
    %v1271 = vsub.s32 %v1267, %v1270
    %vm1272 = vcmp.lt.s32.totalorder %v1271, 0
    %v1273 = vsub.s32 0, %v1271
    %v1274 = vsel %vm1272, %v1273, %v1271
    %v1275 = vclz %v1274
    %v1276 = vsub.s32 %v1275, 2
    %vm1277 = vcmp.gt.s32.totalorder 0, %v1276
    %v1278 = vsel %vm1277, 0, %v1276
    %v1279 = vsub.s32 32, %v1278
    %v1280 = vshll.u32 %v1271, %v1278
    %v1281 = vshrl.u32 %v1263, %v1279
    %v1282 = vor.u32 %v1280, %v1281
    %v1283 = vsub.s32 4294967266, %v1278
    %v1284 = vadd.s32 %v1283, 127
    %v1285 = vshll.u32 %v1284, 23
    %v1286 = vor.u32 4788187, %v1285
    %v1287 = vand.u32 2147483647, %v1286
    %v1289 = vcvt.s32.f32 %v1282
    %v1290 = vmul.f32 %v1289, %v1287
    %v1291 = vxor.u32 %v1290, 2147483648
    %v1292 = vsel %vm1209, %v1291, %v1290
    %v1293 = vsub.s32 4, %v1269
    %v1294 = vsel %vm1209, %v1293, %v1269
    %v1295 = vsel %vm1208, %v995, %v1292
    %v1296 = vsel %vm1208, 0, %v1294
    %v1297 = vcosq.f32.pop %v1295
    %v1298 = vsinq.f32.pop %v1295
    %vm1299 = vweird.f32 %v995
    %v1300 = vadd.s32 %v1296, 3
    %v1301 = vand.u32 %v1300, 3
    %vm1302 = vcmp.lt.s32.totalorder %v1301, 2
    %vm1303 = vcmp.eq.s32.totalorder %v1301, 0
    %v1304 = vxor.u32 %v1298, 2147483648
    %v1305 = vsel %vm1303, %v1297, %v1304
    %vm1306 = vcmp.eq.s32.totalorder %v1301, 2
    %v1307 = vxor.u32 %v1297, 2147483648
    %v1308 = vsel %vm1306, %v1307, %v1298
    %v1309 = vsel %vm1302, %v1305, %v1308
    %v1310 = vsel %vm1299, nan, %v1309
    %v1311 = vand.u32 2147483647, %v997
    %vm1312 = vcmp.le.f32.partialorder %v1311, 0.7853982
    %vm1313 = vcmp.lt.s32.totalorder %v997, 0
    %v1314 = vand.u32 %v997, 2139095040
    %v1315 = vshrl.u32 %v1314, 23
    %v1316 = vsub.s32 %v1315, 127
    %v1317 = vand.u32 2147483647, %v997
    %v1318 = vand.u32 %v1317, 8388607
    %v1319 = vor.u32 %v1318, 8388608
    %v1320 = vsub.s32 0, %v1319
    %v1321 = vadd.s32 %v1316, 1
    %vm1322 = vcmp.gt.s32.totalorder %v1321, 0
    %v1323 = vsel %vm1322, %v1321, 0
    %v1324 = vshrl.u32 %v1323, 5
    %v1325 = vand.u32 %v1323, 31
    %v1326 = vsub.s32 32, %v1325
    %v1327 = vshrl.u32 683565275, %v1326
    %v1328 = vshll.u32 683565275, %v1325
    %v1329 = vshrl.u32 2475754826, %v1326
    %v1330 = vor.u32 %v1328, %v1329
    %v1331 = vshll.u32 2475754826, %v1325
    %v1332 = vshrl.u32 2131351028, %v1326
    %v1333 = vor.u32 %v1331, %v1332
    %v1334 = vshll.u32 2131351028, %v1325
    %v1335 = vshrl.u32 2102212464, %v1326
    %v1336 = vor.u32 %v1334, %v1335
    %v1337 = vshll.u32 2102212464, %v1325
    %v1338 = vshrl.u32 920167782, %v1326
    %v1339 = vor.u32 %v1337, %v1338
    %v1340 = vshll.u32 920167782, %v1325
    %v1341 = vshrl.u32 1326507024, %v1326
    %v1342 = vor.u32 %v1340, %v1341
    %vm1343 = vcmp.lt.s32.totalorder %v1324, 1
    %vm1344 = vcmp.lt.s32.totalorder %v1324, 2
    %vm1345 = vcmp.lt.s32.totalorder %v1324, 3
    %vm1346 = vcmp.lt.s32.totalorder %v1324, 4
    %v1347 = vsel %vm1343, %v1327, %v1330
    %v1348 = vsel %vm1346, %v1336, 2102212464
    %v1349 = vsel %vm1345, %v1333, %v1348
    %v1350 = vsel %vm1344, %v1347, %v1349
    %v1351 = vsel %vm1343, %v1330, %v1333
    %v1352 = vsel %vm1346, %v1339, 920167782
    %v1353 = vsel %vm1345, %v1336, %v1352
    %v1354 = vsel %vm1344, %v1351, %v1353
    %v1355 = vsel %vm1343, %v1333, %v1336
    %v1356 = vsel %vm1346, %v1342, 1326507024
    %v1357 = vsel %vm1345, %v1339, %v1356
    %v1358 = vsel %vm1344, %v1355, %v1357
    %v1359 = vshll.u32 %v1319, 8
    %v1360 = vmul.u32.u64.compose %v1359, %v1358
    %v1361 = vextract.low.u32 %v1360
    %v1362 = vextract.high.u32 %v1360
    %v1363 = vmul.u32.u64.compose %v1359, %v1354
    %v1364 = vextract.low.u32 %v1363
    %v1365 = vextract.high.u32 %v1363
    %v1366 = vmul.u32 %v1359, %v1350
    %v1367 = vadd.s32 %v1362, %v1364
    %vm1368 = vc.u32 %v1362, %v1364
    %v1369 = vadd.s32 %v1365, 1
    %v1370 = vsel %vm1368, %v1369, %v1365
    %v1371 = vadd.s32 %v1366, %v1370
    %v1372 = vadd.s32 %v1371, 536870912
    %v1373 = vshrl.u32 %v1372, 30
    %v1374 = vshll.u32 %v1373, 30
    %v1375 = vsub.s32 %v1371, %v1374
    %vm1376 = vcmp.lt.s32.totalorder %v1375, 0
    %v1377 = vsub.s32 0, %v1375
    %v1378 = vsel %vm1376, %v1377, %v1375
    %v1379 = vclz %v1378
    %v1380 = vsub.s32 %v1379, 2
    %vm1381 = vcmp.gt.s32.totalorder 0, %v1380
    %v1382 = vsel %vm1381, 0, %v1380
    %v1383 = vsub.s32 32, %v1382
    %v1384 = vshll.u32 %v1375, %v1382
    %v1385 = vshrl.u32 %v1367, %v1383
    %v1386 = vor.u32 %v1384, %v1385
    %v1387 = vsub.s32 4294967266, %v1382
    %v1388 = vadd.s32 %v1387, 127
    %v1389 = vshll.u32 %v1388, 23
    %v1390 = vor.u32 4788187, %v1389
    %v1391 = vand.u32 2147483647, %v1390
    %v1393 = vcvt.s32.f32 %v1386
    %v1394 = vmul.f32 %v1393, %v1391
    %v1395 = vxor.u32 %v1394, 2147483648
    %v1396 = vsel %vm1313, %v1395, %v1394
    %v1397 = vsub.s32 4, %v1373
    %v1398 = vsel %vm1313, %v1397, %v1373
    %v1399 = vsel %vm1312, %v997, %v1396
    %v1400 = vsel %vm1312, 0, %v1398
    %v1401 = vcosq.f32.pop %v1399
    %v1402 = vsinq.f32.pop %v1399
    %vm1403 = vweird.f32 %v997
    %v1404 = vadd.s32 %v1400, 3
    %v1405 = vand.u32 %v1404, 3
    %vm1406 = vcmp.lt.s32.totalorder %v1405, 2
    %vm1407 = vcmp.eq.s32.totalorder %v1405, 0
    %v1408 = vxor.u32 %v1402, 2147483648
    %v1409 = vsel %vm1407, %v1401, %v1408
    %vm1410 = vcmp.eq.s32.totalorder %v1405, 2
    %v1411 = vxor.u32 %v1401, 2147483648
    %v1412 = vsel %vm1410, %v1411, %v1402
    %v1413 = vsel %vm1406, %v1409, %v1412
    %v1414 = vsel %vm1403, nan, %v1413
    %1415 = vst [vmem:[#allocation5] sm:$0xff] %v1102
    %1416 = vst [vmem:[#allocation5 + $0x8] sm:$0xff] %v1206
    %1417 = vst [vmem:[#allocation5 + $0x10] sm:$0xff] %v1310
    %1418 = vst [vmem:[#allocation5 + $0x18] sm:$0xff] %v1414
    // Predicated region
    $region18: #{tpu_custom_call.1} parent=1 // pred_check
      _
    $region19: #{tpu_custom_call.1} parent=1 // pred_check_branch
      %1420 = sbr.rel (0) target = $region21
    $region20: #{tpu_custom_call.1} parent=1 // pred_region
      %s1422 = ssub.s32 512, 512
      %1423 = vsyncadd [#allocation4], %s1422
      %s1425 = sshll.u32 [#allocation5], 4
      %s1426 = int_to_ptr.vmem [resolvable:$true] %s1425
      %1428 = dma.vmem_to_hbm [thread:$0]  %s1426, 512, %s3, [#allocation4]
    $region21: #{tpu_custom_call.1} parent=1 // pred_fallthru
      _
    // Predicated region
    $region22: #{tpu_custom_call.1} parent=1 // pred_check
      _
    $region23: #{tpu_custom_call.1} parent=1 // pred_check_branch
      %1430 = sbr.rel (0) target = $region25
    $region24: #{tpu_custom_call.1} parent=1 // pred_region
      %1431 = dma.done [#allocation4], 512
    $region25: #{tpu_custom_call.1} parent=1 // pred_fallthru
      _
    %1432 = vsyncpa [#allocation3], 1
    %1433 = vsyncpa [#allocation4], 1

</llo_original>
